<compile_context>
chip_gen: v6e
topology: v6e:2x2x1
jax: 0.10.0
libtpu: 0.0.40
codegen_flags: <defaults>
</compile_context>

<pallas_src>
import functools

import jax
import jax.numpy as jnp
from jax import lax
from jax.experimental import pallas as pl
from jax.experimental.pallas import tpu as pltpu

_NEG = -1e9          # "-inf" for masked neighbor slots (|h| << 1e9 in practice)
_MAX_TN = 256        # node tile cap: fills the 256-wide MXU on v6e/v7x


def _round_up(x, m):
    return (x + m - 1) // m * m


def _choose_tiling(n):
    """Pad the node count and pick the node tile.

    Keeps >= 2 grid steps whenever possible so dimension_semantics=("parallel",)
    can spread work over both TensorCores on v7x (neutral on v5e/v6e, 1 TC).
    """
    n_pad = _round_up(max(n, 1), 16)
    if n_pad <= 2 * _MAX_TN:
        tn = max(8, n_pad // 2)          # exactly 2 grid steps
    else:
        n_pad = _round_up(n_pad, _MAX_TN)
        tn = _MAX_TN
    return n_pad, tn


def _vmem_cap():
    try:
        return int(0.85 * pltpu.get_tpu_info().vmem_capacity_bytes)
    except Exception:
        return 48 << 20                  # conservative: fits v7x's 64 MiB VMEM


def _vmem_limit(nbytes):
    want = int(1.25 * nbytes) + (4 << 20)
    return int(min(max(32 << 20, want), _vmem_cap()))


def _probe_copy_kernel(x_ref, o_ref):
    o_ref[...] = x_ref[...]


@functools.lru_cache(maxsize=None)
def _single_buffer_ok():
    """Feature-detect pipeline_mode=pl.Buffered(1) support in pallas_call."""
    try:
        x = jnp.zeros((8, 128), jnp.float32)
        y = pl.pallas_call(
            _probe_copy_kernel,
            out_shape=jax.ShapeDtypeStruct((8, 128), jnp.float32),
            grid=(1,),
            in_specs=[pl.BlockSpec((8, 128), lambda i: (0, 0),
                                   pipeline_mode=pl.Buffered(1))],
            out_specs=pl.BlockSpec((8, 128), lambda i: (0, 0)),
        )(x)
        jax.block_until_ready(y)
        return True
    except Exception:
        return False


def _const_spec(block_shape):
    """BlockSpec for grid-invariant operands (weights / resident gather table).

    Single-buffered when supported: default double-buffering wastes VMEM on
    blocks whose index_map never changes -- the resident gather table is the
    dominant VMEM term on v7x's 64 MiB.
    """
    imap = lambda *_: (0,) * len(block_shape)
    if _single_buffer_ok():
        return pl.BlockSpec(block_shape, imap, pipeline_mode=pl.Buffered(1))
    return pl.BlockSpec(block_shape, imap)


# ----------------------------- Pallas kernels ------------------------------ #

def _feat_project_kernel(*refs, num_mlp):
    """Fused layer-0 kernel: global-info MLP + EdgeConv-0 projection.

    refs = (pooled, rois, gw0, gb0, ..., w_cat, b, g_out, p_out, h_out)
    p = [pooled | g] @ W1 (bf16), h = [pooled | g] @ (W2 - W1) + b (f32).
    The 288-wide concatenated feature array never touches HBM; the two row
    blocks of w_cat are contracted separately on the MXU.
    """
    pooled_ref, rois_ref = refs[0], refs[1]
    w_cat_ref, b_ref = refs[2 + 2 * num_mlp], refs[3 + 2 * num_mlp]
    g_ref, p_ref, h_ref = refs[4 + 2 * num_mlp:]

    g = rois_ref[...]
    for l in range(num_mlp):
        w = refs[2 + 2 * l][...]
        bb = refs[3 + 2 * l][...]
        g = jnp.maximum(jnp.dot(g, w, preferred_element_type=jnp.float32) + bb, 0.0)
    g_ref[...] = g

    c = pooled_ref.shape[1]
    bf = w_cat_ref.dtype
    y = jnp.dot(pooled_ref[...].astype(bf), w_cat_ref[:c, :],
                preferred_element_type=jnp.float32)
    y = y + jnp.dot(g.astype(bf), w_cat_ref[c:, :],
                    preferred_element_type=jnp.float32)
    o = p_ref.shape[1]
    p_ref[...] = y[:, :o].astype(p_ref.dtype)      # neighbor-gather table (bf16)
    h_ref[...] = y[:, o:] + b_ref[...]             # per-target term + bias (f32)


def feat_project(pooled, rois, mlp_layers, w_cat, b, tn):
    n_pad, c = pooled.shape
    g_dim = mlp_layers[-1][0].shape[1]
    o = w_cat.shape[1] // 2
    args = [pooled, rois]
    in_specs = [pl.BlockSpec((tn, c), lambda i: (i, 0)),
                pl.BlockSpec((tn, rois.shape[1]), lambda i: (i, 0))]
    for (w, bb) in mlp_layers:
        args += [w, bb]
        in_specs += [_const_spec(w.shape), _const_spec(bb.shape)]
    args += [w_cat, b]
    in_specs += [_const_spec(w_cat.shape), _const_spec(b.shape)]

    nbytes = (2 * tn * (c + rois.shape[1]) * 4
              + 2 * (w_cat.size * 2 + b.size * 4
                     + sum(w.size * 4 + bb.size * 4 for w, bb in mlp_layers))
              + 2 * tn * (g_dim * 4 + o * 2 + o * 4)
              + tn * (2 * o + g_dim + c) * 4)
    kern = functools.partial(_feat_project_kernel, num_mlp=len(mlp_layers))
    return pl.pallas_call(
        kern,
        out_shape=(jax.ShapeDtypeStruct((n_pad, g_dim), jnp.float32),
                   jax.ShapeDtypeStruct((n_pad, o), jnp.bfloat16),
                   jax.ShapeDtypeStruct((n_pad, o), jnp.float32)),
        grid=(n_pad // tn,),
        in_specs=in_specs,
        out_specs=(pl.BlockSpec((tn, g_dim), lambda i: (i, 0)),
                   pl.BlockSpec((tn, o), lambda i: (i, 0)),
                   pl.BlockSpec((tn, o), lambda i: (i, 0))),
        compiler_params=pltpu.CompilerParams(
            dimension_semantics=("parallel",),
            vmem_limit_bytes=_vmem_limit(nbytes)),
    )(*args)


def _project_kernel(x_ref, w_ref, b_ref, p_ref, h_ref):
    # y = x @ [W1 | W2 - W1]  (bf16 operands, f32 accumulation on the MXU)
    x = x_ref[...].astype(w_ref.dtype)
    y = jnp.dot(x, w_ref[...], preferred_element_type=jnp.float32)
    o = p_ref.shape[1]
    p_ref[...] = y[:, :o].astype(p_ref.dtype)
    h_ref[...] = y[:, o:] + b_ref[...]


def project(x, w_cat, b, tn):
    """p = x @ W1 (bf16), h = x @ (W2 - W1) + b (f32), one matmul per tile."""
    n_pad, d = x.shape
    o = w_cat.shape[1] // 2
    nbytes = (2 * tn * d * 4 + 2 * (w_cat.size * 2 + b.size * 4)
              + 2 * tn * o * (2 + 4) + tn * (d + 2 * o) * 4)
    return pl.pallas_call(
        _project_kernel,
        out_shape=(jax.ShapeDtypeStruct((n_pad, o), jnp.bfloat16),
                   jax.ShapeDtypeStruct((n_pad, o), jnp.float32)),
        grid=(n_pad // tn,),
        in_specs=[pl.BlockSpec((tn, d), lambda i: (i, 0)),
                  _const_spec(w_cat.shape),
                  _const_spec(b.shape)],
        out_specs=(pl.BlockSpec((tn, o), lambda i: (i, 0)),
                   pl.BlockSpec((tn, o), lambda i: (i, 0))),
        compiler_params=pltpu.CompilerParams(
            dimension_semantics=("parallel",),
            vmem_limit_bytes=_vmem_limit(nbytes)),
    )(x, w_cat, b)


def _edge_conv_kernel(p_ref, h_ref, idx_ref, o_ref, *, k, kb):
    """EdgeConv message relu(p_j + h_i), max-aggregated over K neighbor slots.

    All one-hot gathers in a slot group are stacked along M into a single
    (kb*TN, P) @ (P, o) MXU matmul; masked slots (idx == P) contribute -1e9 to
    the max, and +h / relu are applied once after the reduction
    (max_k relu(pj_k + h) == relu(max_k pj_k + h) since relu(.+h) is monotone;
    fully masked rows give relu(-1e9 + h) == 0, matching PyG's fill).
    """
    p_all = p_ref[...]                  # (P, o) bf16 gather table (all nodes)
    h = h_ref[...]                      # (TN, o) f32:  x_i @ (W2 - W1) + b
    idx = idx_ref[...]                  # (TN, K) int32; masked slots == P
    tn, o = h.shape
    p_rows = p_all.shape[0]
    iota = lax.broadcasted_iota(jnp.int32, (tn, p_rows), 1)
    m = jnp.full((tn, o), _NEG, jnp.float32)
    for k0 in range(0, k, kb):
        slots = list(range(k0, min(k0 + kb, k)))
        onehot = jnp.concatenate(
            [(idx[:, kk:kk + 1] == iota).astype(p_all.dtype) for kk in slots],
            axis=0)                                                   # (g*TN, P)
        pj = jnp.dot(onehot, p_all, preferred_element_type=jnp.float32)
        for j, kk in enumerate(slots):
            valid = idx[:, kk:kk + 1] < p_rows
            m = jnp.maximum(m, jnp.where(valid, pj[j * tn:(j + 1) * tn, :], _NEG))
    o_ref[...] = jnp.maximum(m + h, 0.0)


def edge_conv(p_src, h, idx, tn):
    p_rows, o = p_src.shape
    n_pad = h.shape[0]
    k = idx.shape[1]
    kb = max(1, min(k, 1024 // tn))     # cap stacked one-hot rows / VMEM use
    bufs = 1 if _single_buffer_ok() else 2
    nbytes = (bufs * p_src.size * 2                        # resident gather table
              + 2 * tn * (o * 4 + k * 4) + 2 * tn * o * 4  # pipelined in/out
              + tn * p_rows * 4 + kb * tn * p_rows * 2     # iota + stacked one-hot
              + (kb + 2) * tn * o * 4)                     # pj + m + temporaries
    kern = functools.partial(_edge_conv_kernel, k=k, kb=kb)
    return pl.pallas_call(
        kern,
        out_shape=jax.ShapeDtypeStruct((n_pad, o), jnp.float32),
        grid=(n_pad // tn,),
        in_specs=[
            # Whole projected (bf16, 128-lane) gather table stays resident in
            # VMEM (single-buffered when supported: its block index never moves).
            # TODO(synk): for very large node counts, block the gather source over
            # a second "arbitrary" grid axis with a running-max VMEM accumulator.
            _const_spec((p_rows, o)),
            pl.BlockSpec((tn, o), lambda i: (i, 0)),
            pl.BlockSpec((tn, k), lambda i: (i, 0)),
        ],
        out_specs=pl.BlockSpec((tn, o), lambda i: (i, 0)),
        compiler_params=pltpu.CompilerParams(
            dimension_semantics=("parallel",),
            vmem_limit_bytes=_vmem_limit(nbytes)),
    )(p_src, h, idx)


# ------------------------------- JAX glue ---------------------------------- #

def build_knn(centers, labels, batch_vec, k, num_classes, connect_only_same_class,
              sentinel):
    """Dense replacement for torch_geometric knn_graph (flow source->target)."""
    n = centers.shape[0]
    d2 = jnp.sum((centers[:, None, :] - centers[None, :, :]) ** 2, axis=-1)
    valid = (batch_vec[:, None] == batch_vec[None, :]) & (~jnp.eye(n, dtype=bool))
    if connect_only_same_class:
        in_range = (labels >= 1) & (labels <= num_classes)
        valid &= (labels[:, None] == labels[None, :])
        valid &= in_range[:, None] & in_range[None, :]
    big = jnp.float32(1e30)
    d2m = jnp.where(valid, d2, big)
    vals, idx = lax.top_k(-d2m, k)                 # k nearest sources j per target i
    mask = (-vals) < (big * 0.5)
    idx = jnp.where(mask, idx, sentinel).astype(jnp.int32)
    return idx, mask.astype(jnp.float32)


def xavier_uniform(key, fan_in, fan_out):
    limit = (6.0 / (fan_in + fan_out)) ** 0.5
    return jax.random.uniform(key, (fan_in, fan_out), jnp.float32, -limit, limit)


def init_params(key, cfg, pooled_dim):
    params = {}
    k = key
    global_cfg = cfg.get('GLOBAL_INFORMATION', None)
    global_layers = []
    din = 7
    if global_cfg:
        for h in global_cfg['MLP_LAYERS']:
            k, k1, k2 = jax.random.split(k, 3)
            w = xavier_uniform(k1, din, h)
            bound = 1.0 / (din ** 0.5)
            b = jax.random.uniform(k2, (1, h), jnp.float32, -bound, bound)
            global_layers.append((w, b))
            din = h
    params['global_mlp'] = global_layers

    gnn_input_dim = (global_cfg['MLP_LAYERS'][-1] if global_cfg else 0) + pooled_dim
    prev = gnn_input_dim
    gnn_layers = []
    for h in cfg['LAYERS']:
        k, k1, k2 = jax.random.split(k, 3)
        w = xavier_uniform(k1, 2 * prev, h)
        bound = 1.0 / ((2 * prev) ** 0.5)
        b = jax.random.uniform(k2, (1, h), jnp.float32, -bound, bound)
        # fold (x_j - x_i) @ W1 + x_i @ W2  ==  x_j @ W1 + x_i @ (W2 - W1);
        # store [W1 | W2 - W1] as a single lane-dense bf16 MXU operand.
        w_cat = jnp.concatenate([w[:prev], w[prev:] - w[:prev]], axis=1)
        gnn_layers.append((w_cat.astype(jnp.bfloat16), b))
        prev = h
    params['gnn'] = gnn_layers
    params['gnn_input_dim'] = gnn_input_dim
    return params


def gnn_forward(batch_dict, params, cfg, num_classes=3):
    pooled = batch_dict['pooled_features']         # (B, N, 256)
    rois = batch_dict['rois']                      # (B, N, 7)
    labels = batch_dict['roi_labels']              # (B, N)
    B, N, C = pooled.shape
    n = B * N

    n_pad, tn = _choose_tiling(n)
    pad = n_pad - n

    pooled_flat = jnp.pad(pooled.reshape(n, C).astype(jnp.float32),
                          ((0, pad), (0, 0)))
    rois_flat = jnp.pad(rois.reshape(n, 7).astype(jnp.float32), ((0, pad), (0, 0)))

    labels_flat = labels.reshape(-1)
    batch_vec = jnp.repeat(jnp.arange(B), N)
    centers = rois.reshape(n, 7)[:, :3].astype(jnp.float32)

    # TODO(synk): only the 'knn_graph' builder is implemented; 'radius_graph'
    # (variable-degree, dynamic edge count) has no clean fixed-shape equivalent.
    idx, mask = build_knn(centers, labels_flat, batch_vec, cfg['GRAPH']['K'],
                          num_classes, cfg['GRAPH']['CONNECT_ONLY_SAME_CLASS'],
                          sentinel=n_pad)
    idx_pad = jnp.pad(idx, ((0, pad), (0, 0)), constant_values=n_pad)

    out = dict(batch_dict)
    out['gnn_edges'] = (idx, mask)     # dense (node, K) table; masked slots == n_pad

    gnn_layers = params['gnn']
    mlp_layers = params['global_mlp']

    feat_parts = [pooled_flat]
    if gnn_layers:
        w_cat0, b0 = gnn_layers[0]
        if mlp_layers:
            g, p, h = feat_project(pooled_flat, rois_flat, mlp_layers, w_cat0, b0, tn)
            feat_parts.append(g)
        else:
            p, h = project(pooled_flat, w_cat0, b0, tn)
        x = edge_conv(p, h, idx_pad, tn)
        feat_parts.append(x)
        for (w_cat, b) in gnn_layers[1:]:
            p, h = project(x, w_cat, b, tn)
            x = edge_conv(p, h, idx_pad, tn)
            feat_parts.append(x)
    elif mlp_layers:
        g = rois_flat
        for (w, bb) in mlp_layers:     # tiny MLP, no EdgeConv layers: plain XLA
            g = jnp.maximum(g @ w + bb, 0.0)
        feat_parts.append(g)

    # TODO(synk): optionally write per-layer outputs straight into column slices
    # of a preallocated related_features buffer to drop this final concat.
    out['related_features'] = jnp.concatenate(feat_parts, axis=-1)[:n]
    return out


# --------------------------------- main ------------------------------------ #

if __name__ == "__main__":
    B, N, C = 2, 16, 256
    NUM_CLASSES = 3
    cfg = {
        'GRAPH': {'NAME': 'knn_graph', 'K': 4, 'CONNECT_ONLY_SAME_CLASS': True},
        'LAYERS': [128, 128],
        'GLOBAL_INFORMATION': {'MLP_LAYERS': [32, 32]},
    }

    key = jax.random.PRNGKey(0)
    k0, k1, k2, k3 = jax.random.split(key, 4)
    pooled_features = jax.random.normal(k0, (B, N, C), jnp.float32)
    rois = jax.random.normal(k1, (B, N, 7), jnp.float32)
    roi_labels = jax.random.randint(k2, (B, N), 1, NUM_CLASSES + 1)

    params = init_params(k3, cfg, C)

    batch_dict = {
        'pooled_features': pooled_features,
        'rois': rois,
        'roi_labels': roi_labels,
    }
    out = gnn_forward(batch_dict, params, cfg, NUM_CLASSES)
    related = jax.block_until_ready(out['related_features'])

    expected_dim = params['gnn_input_dim'] + sum(cfg['LAYERS'])
    assert related.shape == (B * N, expected_dim), related.shape
    assert bool(jnp.all(jnp.isfinite(related)))
    print("KERNEL_OK")
</pallas_src>

<mosaic_0001>
module attributes {stable_mosaic.version = 11 : i64} {
  func.func @_probe_copy_kernel(%arg0: i32, %arg1: memref<8x128xf32, #tpu.memory_space<vmem>>, %arg2: memref<8x128xf32, #tpu.memory_space<vmem>>) attributes {dimension_semantics = [#tpu.dimension_semantics<arbitrary>], iteration_bounds = array<i64: 1>, scalar_prefetch = 0 : i64, scratch_operands = 0 : i64, tpu.core_type = #tpu.core_type<tc>, window_params = [{pipeline_mode = #tpu.pipeline_mode<synchronous>, transform_indices = @transform_0, window_bounds = array<i64: 8, 128>}, {pipeline_mode = #tpu.pipeline_mode<synchronous>, transform_indices = @transform_1, window_bounds = array<i64: 8, 128>}]} {
    %c0 = arith.constant 0 : index
    %c0_0 = arith.constant 0 : index
    %0 = vector.load %arg1[%c0, %c0_0] : memref<8x128xf32, #tpu.memory_space<vmem>>, vector<8x128xf32>
    %c0_1 = arith.constant 0 : index
    %c0_2 = arith.constant 0 : index
    %1 = vector.load %arg2[%c0_1, %c0_2] : memref<8x128xf32, #tpu.memory_space<vmem>>, vector<8x128xf32>
    tpu.vector_store %arg2[%c0_1, %c0_2], %0 {strides = array<i32>} : memref<8x128xf32, #tpu.memory_space<vmem>>, vector<8x128xf32>,
    return
  }
  func.func @transform_0(%arg0: i32) -> (i32, i32) {
    %c0_i32 = arith.constant 0 : i32
    %c0_i32_0 = arith.constant 0 : i32
    %c0_i32_1 = arith.constant 0 : i32
    return %c0_i32, %c0_i32_0 : i32, i32
  }
  func.func @transform_1(%arg0: i32) -> (i32, i32) {
    %c0_i32 = arith.constant 0 : i32
    %c0_i32_0 = arith.constant 0 : i32
    %c0_i32_1 = arith.constant 0 : i32
    return %c0_i32, %c0_i32_0 : i32, i32
  }
}

module attributes {stable_mosaic.version = 11 : i64} {
  func.func @_feat_project_kernel(%arg0: i32, %arg1: memref<16x256xf32, #tpu.memory_space<vmem>>, %arg2: memref<16x7xf32, #tpu.memory_space<vmem>>, %arg3: memref<7x32xf32, #tpu.memory_space<vmem>>, %arg4: memref<1x32xf32, #tpu.memory_space<vmem>>, %arg5: memref<32x32xf32, #tpu.memory_space<vmem>>, %arg6: memref<1x32xf32, #tpu.memory_space<vmem>>, %arg7: memref<288x256xbf16, #tpu.memory_space<vmem>>, %arg8: memref<1x128xf32, #tpu.memory_space<vmem>>, %arg9: memref<16x32xf32, #tpu.memory_space<vmem>>, %arg10: memref<16x128xbf16, #tpu.memory_space<vmem>>, %arg11: memref<16x128xf32, #tpu.memory_space<vmem>>) attributes {dimension_semantics = [#tpu.dimension_semantics<parallel>], iteration_bounds = array<i64: 2>, scalar_prefetch = 0 : i64, scratch_operands = 0 : i64, tpu.core_type = #tpu.core_type<tc>, window_params = [{transform_indices = @transform_0, window_bounds = array<i64: 16, 256>}, {transform_indices = @transform_1, window_bounds = array<i64: 16, 7>}, {pipeline_mode = #tpu.pipeline_mode<synchronous>, transform_indices = @transform_2, window_bounds = array<i64: 7, 32>}, {pipeline_mode = #tpu.pipeline_mode<synchronous>, transform_indices = @transform_3, window_bounds = array<i64: 1, 32>}, {pipeline_mode = #tpu.pipeline_mode<synchronous>, transform_indices = @transform_4, window_bounds = array<i64: 32, 32>}, {pipeline_mode = #tpu.pipeline_mode<synchronous>, transform_indices = @transform_5, window_bounds = array<i64: 1, 32>}, {pipeline_mode = #tpu.pipeline_mode<synchronous>, transform_indices = @transform_6, window_bounds = array<i64: 288, 256>}, {pipeline_mode = #tpu.pipeline_mode<synchronous>, transform_indices = @transform_7, window_bounds = array<i64: 1, 128>}, {transform_indices = @transform_8, window_bounds = array<i64: 16, 32>}, {transform_indices = @transform_9, window_bounds = array<i64: 16, 128>}, {transform_indices = @transform_10, window_bounds = array<i64: 16, 128>}]} {
    %c0 = arith.constant 0 : index
    %c0_0 = arith.constant 0 : index
    %0 = vector.load %arg2[%c0, %c0_0] : memref<16x7xf32, #tpu.memory_space<vmem>>, vector<16x7xf32>
    %c0_1 = arith.constant 0 : index
    %c0_2 = arith.constant 0 : index
    %1 = vector.load %arg3[%c0_1, %c0_2] : memref<7x32xf32, #tpu.memory_space<vmem>>, vector<7x32xf32>
    %c0_3 = arith.constant 0 : index
    %c0_4 = arith.constant 0 : index
    %2 = vector.load %arg4[%c0_3, %c0_4] : memref<1x32xf32, #tpu.memory_space<vmem>>, vector<1x32xf32>
    %cst = arith.constant dense<0.000000e+00> : vector<16x32xf32>
    %3 = tpu.matmul %0, %1, %cst {dimension_numbers = #tpu.dot_dimension_numbers<[1], [0], [0], [1], [0, 0, 1, 1], [], []>} : vector<16x7xf32>, vector<7x32xf32>, vector<16x32xf32> -> vector<16x32xf32>
    %4 = vector.broadcast %2 : vector<1x32xf32> to vector<16x32xf32>
    %5 = arith.addf %3, %4 : vector<16x32xf32>
    %cst_5 = arith.constant 0.000000e+00 : f32
    %6 = vector.broadcast %cst_5 : f32 to vector<16x32xf32>
    %7 = arith.maximumf %5, %6 : vector<16x32xf32>
    %c0_6 = arith.constant 0 : index
    %c0_7 = arith.constant 0 : index
    %8 = vector.load %arg5[%c0_6, %c0_7] : memref<32x32xf32, #tpu.memory_space<vmem>>, vector<32x32xf32>
    %c0_8 = arith.constant 0 : index
    %c0_9 = arith.constant 0 : index
    %9 = vector.load %arg6[%c0_8, %c0_9] : memref<1x32xf32, #tpu.memory_space<vmem>>, vector<1x32xf32>
    %cst_10 = arith.constant dense<0.000000e+00> : vector<16x32xf32>
    %10 = tpu.matmul %7, %8, %cst_10 {dimension_numbers = #tpu.dot_dimension_numbers<[1], [0], [0], [1], [0, 0, 1, 1], [], []>} : vector<16x32xf32>, vector<32x32xf32>, vector<16x32xf32> -> vector<16x32xf32>
    %11 = vector.broadcast %9 : vector<1x32xf32> to vector<16x32xf32>
    %12 = arith.addf %10, %11 : vector<16x32xf32>
    %cst_11 = arith.constant 0.000000e+00 : f32
    %13 = vector.broadcast %cst_11 : f32 to vector<16x32xf32>
    %14 = arith.maximumf %12, %13 : vector<16x32xf32>
    %c0_12 = arith.constant 0 : index
    %c0_13 = arith.constant 0 : index
    %15 = vector.load %arg9[%c0_12, %c0_13] : memref<16x32xf32, #tpu.memory_space<vmem>>, vector<16x32xf32>
    tpu.vector_store %arg9[%c0_12, %c0_13], %14 {strides = array<i32>} : memref<16x32xf32, #tpu.memory_space<vmem>>, vector<16x32xf32>,
    %c0_14 = arith.constant 0 : index
    %c0_15 = arith.constant 0 : index
    %16 = vector.load %arg1[%c0_14, %c0_15] : memref<16x256xf32, #tpu.memory_space<vmem>>, vector<16x256xf32>
    %17 = arith.truncf %16 : vector<16x256xf32> to vector<16x256xbf16>
    %c0_16 = arith.constant 0 : index
    %c0_17 = arith.constant 0 : index
    %18 = vector.load %arg7[%c0_16, %c0_17] : memref<288x256xbf16, #tpu.memory_space<vmem>>, vector<256x256xbf16>
    %cst_18 = arith.constant dense<0.000000e+00> : vector<16x256xf32>
    %19 = tpu.matmul %17, %18, %cst_18 {dimension_numbers = #tpu.dot_dimension_numbers<[1], [0], [0], [1], [0, 0, 1, 1], [], []>} : vector<16x256xbf16>, vector<256x256xbf16>, vector<16x256xf32> -> vector<16x256xf32>
    %20 = arith.truncf %14 : vector<16x32xf32> to vector<16x32xbf16>
    %c256 = arith.constant 256 : index
    %c0_19 = arith.constant 0 : index
    %21 = vector.load %arg7[%c256, %c0_19] : memref<288x256xbf16, #tpu.memory_space<vmem>>, vector<32x256xbf16>
    %cst_20 = arith.constant dense<0.000000e+00> : vector<16x256xf32>
    %22 = tpu.matmul %20, %21, %cst_20 {dimension_numbers = #tpu.dot_dimension_numbers<[1], [0], [0], [1], [0, 0, 1, 1], [], []>} : vector<16x32xbf16>, vector<32x256xbf16>, vector<16x256xf32> -> vector<16x256xf32>
    %23 = arith.addf %19, %22 : vector<16x256xf32>
    %24 = vector.extract_strided_slice %23 {offsets = [0, 0], sizes = [16, 128], strides = [1, 1]} : vector<16x256xf32> to vector<16x128xf32>
    %25 = arith.truncf %24 : vector<16x128xf32> to vector<16x128xbf16>
    %c0_21 = arith.constant 0 : index
    %c0_22 = arith.constant 0 : index
    %26 = vector.load %arg10[%c0_21, %c0_22] : memref<16x128xbf16, #tpu.memory_space<vmem>>, vector<16x128xbf16>
    tpu.vector_store %arg10[%c0_21, %c0_22], %25 {strides = array<i32>} : memref<16x128xbf16, #tpu.memory_space<vmem>>, vector<16x128xbf16>,
    %27 = vector.extract_strided_slice %23 {offsets = [0, 128], sizes = [16, 128], strides = [1, 1]} : vector<16x256xf32> to vector<16x128xf32>
    %c0_23 = arith.constant 0 : index
    %c0_24 = arith.constant 0 : index
    %28 = vector.load %arg8[%c0_23, %c0_24] : memref<1x128xf32, #tpu.memory_space<vmem>>, vector<1x128xf32>
    %29 = vector.broadcast %28 : vector<1x128xf32> to vector<16x128xf32>
    %30 = arith.addf %27, %29 : vector<16x128xf32>
    %c0_25 = arith.constant 0 : index
    %c0_26 = arith.constant 0 : index
    %31 = vector.load %arg11[%c0_25, %c0_26] : memref<16x128xf32, #tpu.memory_space<vmem>>, vector<16x128xf32>
    tpu.vector_store %arg11[%c0_25, %c0_26], %30 {strides = array<i32>} : memref<16x128xf32, #tpu.memory_space<vmem>>, vector<16x128xf32>,
    return
  }
  func.func @transform_0(%arg0: i32) -> (i32, i32) {
    %c0_i32 = arith.constant 0 : i32
    %c0_i32_0 = arith.constant 0 : i32
    return %arg0, %c0_i32 : i32, i32
  }
  func.func @transform_1(%arg0: i32) -> (i32, i32) {
    %c0_i32 = arith.constant 0 : i32
    %c0_i32_0 = arith.constant 0 : i32
    return %arg0, %c0_i32 : i32, i32
  }
  func.func @transform_2(%arg0: i32) -> (i32, i32) {
    %c0_i32 = arith.constant 0 : i32
    %c0_i32_0 = arith.constant 0 : i32
    %c0_i32_1 = arith.constant 0 : i32
    return %c0_i32, %c0_i32_0 : i32, i32
  }
  func.func @transform_3(%arg0: i32) -> (i32, i32) {
    %c0_i32 = arith.constant 0 : i32
    %c0_i32_0 = arith.constant 0 : i32
    %c0_i32_1 = arith.constant 0 : i32
    return %c0_i32, %c0_i32_0 : i32, i32
  }
  func.func @transform_4(%arg0: i32) -> (i32, i32) {
    %c0_i32 = arith.constant 0 : i32
    %c0_i32_0 = arith.constant 0 : i32
    %c0_i32_1 = arith.constant 0 : i32
    return %c0_i32, %c0_i32_0 : i32, i32
  }
  func.func @transform_5(%arg0: i32) -> (i32, i32) {
    %c0_i32 = arith.constant 0 : i32
    %c0_i32_0 = arith.constant 0 : i32
    %c0_i32_1 = arith.constant 0 : i32
    return %c0_i32, %c0_i32_0 : i32, i32
  }
  func.func @transform_6(%arg0: i32) -> (i32, i32) {
    %c0_i32 = arith.constant 0 : i32
    %c0_i32_0 = arith.constant 0 : i32
    %c0_i32_1 = arith.constant 0 : i32
    return %c0_i32, %c0_i32_0 : i32, i32
  }
  func.func @transform_7(%arg0: i32) -> (i32, i32) {
    %c0_i32 = arith.constant 0 : i32
    %c0_i32_0 = arith.constant 0 : i32
    %c0_i32_1 = arith.constant 0 : i32
    return %c0_i32, %c0_i32_0 : i32, i32
  }
  func.func @transform_8(%arg0: i32) -> (i32, i32) {
    %c0_i32 = arith.constant 0 : i32
    %c0_i32_0 = arith.constant 0 : i32
    return %arg0, %c0_i32 : i32, i32
  }
  func.func @transform_9(%arg0: i32) -> (i32, i32) {
    %c0_i32 = arith.constant 0 : i32
    %c0_i32_0 = arith.constant 0 : i32
    return %arg0, %c0_i32 : i32, i32
  }
  func.func @transform_10(%arg0: i32) -> (i32, i32) {
    %c0_i32 = arith.constant 0 : i32
    %c0_i32_0 = arith.constant 0 : i32
    return %arg0, %c0_i32 : i32, i32
  }
}

</mosaic_0001>

<llo_original>
// kernel: tpu_custom_call.1
$region0: #{tpu_custom_call.1}
  #allocation0 [shape = 'u32[]', space=smem, size = 0x4, offset = 0x4, fixed_abs, tag = 'smem constant byte address 0x4 - core index']
  #allocation1 [shape = 'u32[144,128]{1,0:T(1,128)}', space=vmem, size = 0x12000, scoped, tag = 'internal scratch']
  %s0 = inlined_call_operand.hbm [shape: f32[8,128], index: 0, kind: input, shape index: {}]
  %s1 = inlined_call_operand.hbm [shape: f32[8,128], index: 1, kind: output, shape index: {}]
  %s2 = sld [smem:[#allocation0]]
  $region18: #{tpu_custom_call.1} parent=0
    _
  %s4 = ssub.s32 1, %s2
  %s5 = scalar_select 0, %s4, %s2
  $region1: #{tpu_custom_call.1} parent=0
    #allocation2 [shape = 'u8[4096]{0}', space=vmem, size = 0x1000, scoped, tag = 'input window, operand 0, single buffered']
    #allocation3 [shape = 's32[1]{0}', space=sflag, size = 0x4, scoped, tag = 'scoped memory for tpu_custom_call.1']
    #allocation4 [shape = 's32[1]{0}', space=sflag, size = 0x4, scoped, tag = 'scoped memory for tpu_custom_call.1']
    #allocation5 [shape = 'u8[4096]{0}', space=vmem, size = 0x1000, scoped, tag = 'output window, operand 0, single buffered']
    %6 = vsyncpa [#allocation3], 0
    %7 = vsyncpa [#allocation4], 0
    // Predicated region
    $region2: #{tpu_custom_call.1} parent=1 // pred_check
      _
    $region3: #{tpu_custom_call.1} parent=1 // pred_check_branch
      %9 = sbr.rel (0) target = $region5
    $region4: #{tpu_custom_call.1} parent=1 // pred_region
      %s11 = ssub.s32 128, 128
      %12 = vsyncadd [#allocation3], %s11
      %s14 = sshll.u32 [#allocation2], 4
      %s15 = int_to_ptr.vmem [resolvable:$true] %s14
      %17 = dma.hbm_to_vmem [thread:$0]  %s0, 128, %s15, [#allocation3]
    $region5: #{tpu_custom_call.1} parent=1 // pred_fallthru
      _
    // Predicated region
    $region6: #{tpu_custom_call.1} parent=1 // pred_check
      _
    $region7: #{tpu_custom_call.1} parent=1 // pred_check_branch
      %19 = sbr.rel (0) target = $region9
    $region8: #{tpu_custom_call.1} parent=1 // pred_region
      %20 = dma.done [#allocation3], 128
    $region9: #{tpu_custom_call.1} parent=1 // pred_fallthru
      _
    %v21 = vld [vmem:[#allocation2] sm:$0xff]
    %22 = vst [vmem:[#allocation5] sm:$0xff] %v21
    // Predicated region
    $region10: #{tpu_custom_call.1} parent=1 // pred_check
      _
    $region11: #{tpu_custom_call.1} parent=1 // pred_check_branch
      %24 = sbr.rel (0) target = $region13
    $region12: #{tpu_custom_call.1} parent=1 // pred_region
      %s26 = ssub.s32 128, 128
      %27 = vsyncadd [#allocation4], %s26
      %s29 = sshll.u32 [#allocation5], 4
      %s30 = int_to_ptr.vmem [resolvable:$true] %s29
      %32 = dma.vmem_to_hbm [thread:$0]  %s30, 128, %s1, [#allocation4]
    $region13: #{tpu_custom_call.1} parent=1 // pred_fallthru
      _
    // Predicated region
    $region14: #{tpu_custom_call.1} parent=1 // pred_check
      _
    $region15: #{tpu_custom_call.1} parent=1 // pred_check_branch
      %34 = sbr.rel (0) target = $region17
    $region16: #{tpu_custom_call.1} parent=1 // pred_region
      %35 = dma.done [#allocation4], 128
    $region17: #{tpu_custom_call.1} parent=1 // pred_fallthru
      _
    %36 = vsyncpa [#allocation3], 1
    %37 = vsyncpa [#allocation4], 1

// kernel: tpu_custom_call.1
$region0: #{tpu_custom_call.1}
  #allocation0 [shape = 'u32[]', space=smem, size = 0x4, offset = 0x4, fixed_abs, tag = 'smem constant byte address 0x4 - core index']
  #allocation1 [shape = 'u32[144,128]{1,0:T(1,128)}', space=vmem, size = 0x12000, scoped, tag = 'internal scratch']
  %s0 = inlined_call_operand.hbm [shape: f32[32,256], index: 0, kind: input, shape index: {}]
  %s1 = inlined_call_operand.vmem [shape: f32[32,7], index: 1, kind: input, shape index: {}]
  %s2 = inlined_call_operand.vmem [shape: f32[7,32], index: 2, kind: input, shape index: {}]
  %s3 = inlined_call_operand.vmem [shape: f32[1,32], index: 3, kind: input, shape index: {}]
  %s4 = inlined_call_operand.vmem [shape: f32[32,32], index: 4, kind: input, shape index: {}]
  %s5 = inlined_call_operand.vmem [shape: f32[1,32], index: 5, kind: input, shape index: {}]
  %s6 = inlined_call_operand.hbm [shape: bf16[288,256], index: 6, kind: input, shape index: {}]
  %s7 = inlined_call_operand.vmem [shape: f32[1,128], index: 7, kind: input, shape index: {}]
  %s8 = inlined_call_operand.hbm [shape: f32[32,32], index: 8, kind: output, shape index: {0}]
  %s9 = inlined_call_operand.hbm [shape: bf16[32,128], index: 9, kind: output, shape index: {1}]
  %s10 = inlined_call_operand.hbm [shape: f32[32,128], index: 10, kind: output, shape index: {2}]
  %11 = xla_tuple %s8, %s9, %s10
  %s12 = sld [smem:[#allocation0]]
  $region89: #{tpu_custom_call.1} parent=0
    _
  %s14 = ssub.s32 1, %s12
  %s15 = scalar_select 0, %s14, %s12
  $region1: #{tpu_custom_call.1} parent=0
    #allocation2 [shape = 'u8[32768]{0}', space=vmem, size = 0x8000, scoped, tag = 'input window, operand 0']
    #allocation3 [shape = 's32[2]{0}', space=sflag, size = 0x8, scoped, tag = 'scoped memory for tpu_custom_call.1']
    #allocation4 [shape = 's32[2]{0}', space=sflag, size = 0x8, scoped, tag = 'scoped memory for tpu_custom_call.1']
    #allocation5 [shape = 'u8[147456]{0}', space=vmem, size = 0x24000, scoped, tag = 'input window, operand 6, single buffered']
    #allocation6 [shape = 's32[1]{0}', space=sflag, size = 0x4, scoped, tag = 'scoped memory for tpu_custom_call.1']
    #allocation7 [shape = 'u8[16384]{0}', space=vmem, size = 0x4000, scoped, tag = 'output window, operand 0']
    #allocation8 [shape = 'u8[8192]{0}', space=vmem, size = 0x2000, scoped, tag = 'output window, operand 1']
    #allocation9 [shape = 's32[2]{0}', space=sflag, size = 0x8, scoped, tag = 'scoped memory for tpu_custom_call.1']
    #allocation10 [shape = 'u8[16384]{0}', space=vmem, size = 0x4000, scoped, tag = 'output window, operand 2']
    %16 = vsyncpa [#allocation3], 0
    %s17 = scalar_lea.sflag [#allocation3], 1
    %18 = vsyncpa %s17, 0
    %19 = vsyncpa [#allocation6], 0
    %20 = vsyncpa [#allocation4], 0
    %s21 = scalar_lea.sflag [#allocation4], 1
    %22 = vsyncpa %s21, 0
    %23 = vsyncpa [#allocation9], 0
    %s24 = scalar_lea.sflag [#allocation9], 1
    %25 = vsyncpa %s24, 0
    loop: start=0, step=1, limit=4
    $region2: #{tpu_custom_call.1} parent=1 // loop_pre_header
      _
    $region3: #{tpu_custom_call.1} parent=1 // loop_header
      %s27 = sphi 0, %s31
      %p28 = scmp.ge.s32.totalorder %s27, 4
      %s37 = sphi 0, %s39
      %s40 = sphi 0, %s37
      %s41 = sphi 0, %s40
      %s57 = sphi 0, %s41
      %s63 = sphi 0, %s65
      %s66 = sphi 0, %s63
      %s67 = sphi 0, %s66
      %s83 = sphi 0, %s67
      %s87 = sphi 0, %s87
      %s89 = sphi 0, %s87
      %s90 = sphi 0, %s89
      %s104 = sphi 0, %s90
      %s108 = sphi 0, %s108
      %s110 = sphi 0, %s108
      %s111 = sphi 0, %s110
      %s125 = sphi 0, %s111
      %s129 = sphi 0, %s129
      %s131 = sphi 0, %s129
      %s132 = sphi 0, %s131
      %s146 = sphi 0, %s132
      %s150 = sphi 0, %s150
      %s152 = sphi 0, %s150
      %s153 = sphi 0, %s152
      %s167 = sphi 0, %s153
      %s171 = sphi 0, %s171
      %s173 = sphi 0, %s171
      %s174 = sphi 0, %s173
      %s188 = sphi 0, %s174
      %s192 = sphi 0, %s192
      %s194 = sphi 0, %s192
      %s195 = sphi 0, %s194
      %s209 = sphi 0, %s195
      %s215 = sphi 0, %s217
      %s218 = sphi 0, %s215
      %s219 = sphi 0, %s218
      %s235 = sphi 0, %s219
      %s241 = sphi 0, %s243
      %s244 = sphi 0, %s241
      %s245 = sphi 0, %s244
      %s261 = sphi 0, %s245
      %s267 = sphi 0, %s269
      %s270 = sphi 0, %s267
      %s271 = sphi 0, %s270
      %s287 = sphi 0, %s271
    $region4: #{tpu_custom_call.1} parent=1 // loop_header_branch
      %30 = sbr.rel (%p28) target = $region8
    $region5: #{tpu_custom_call.1} parent=1 // loop_body
      %s32 = ssub.s32 %s27, 1
      %s33 = ssub.s32 %s27, 2
      %s34 = sadd.s32 %s27, 1
      %s35 = ssub.s32 %s27, %s34
      %p36 = scmp.eq.s32.totalorder %s35, 0
      %s38 = sadd.s32 %s37, 1
      %s39 = scalar_select %p36, %s37, %s38
      %p42 = pneg %p36
      %p43 = scmp.eq.s32.totalorder %s27, 1
      %p44 = por %p42, %p43
      %p45 = scmp.ne.s32.totalorder %s37, %s40
      %p46 = scmp.eq.s32.totalorder %s27, 0
      %p47 = por %p45, %p46
      %p48 = scmp.ne.s32.totalorder %s37, %s40
      %p49 = scmp.eq.s32.totalorder %s32, 1
      %p50 = por %p48, %p49
      %p51 = scmp.ne.s32.totalorder %s40, %s41
      %p52 = scmp.eq.s32.totalorder %s32, 0
      %p53 = por %p51, %p52
      %p54 = scmp.ne.s32.totalorder %s40, %s41
      %p55 = scmp.eq.s32.totalorder %s33, 1
      %p56 = por %p54, %p55
      %p58 = scmp.ne.s32.totalorder %s41, %s57
      %p59 = scmp.eq.s32.totalorder %s33, 0
      %p60 = por %p58, %p59
      %s61 = ssub.s32 %s27, %s34
      %p62 = scmp.eq.s32.totalorder %s61, 0
      %s64 = sadd.s32 %s63, 1
      %s65 = scalar_select %p62, %s63, %s64
      %p68 = pneg %p62
      %p69 = scmp.eq.s32.totalorder %s27, 1
      %p70 = por %p68, %p69
      %p71 = scmp.ne.s32.totalorder %s63, %s66
      %p72 = scmp.eq.s32.totalorder %s27, 0
      %p73 = por %p71, %p72
      %p74 = scmp.ne.s32.totalorder %s63, %s66
      %p75 = scmp.eq.s32.totalorder %s32, 1
      %p76 = por %p74, %p75
      %p77 = scmp.ne.s32.totalorder %s66, %s67
      %p78 = scmp.eq.s32.totalorder %s32, 0
      %p79 = por %p77, %p78
      %p80 = scmp.ne.s32.totalorder %s66, %s67
      %p81 = scmp.eq.s32.totalorder %s33, 1
      %p82 = por %p80, %p81
      %p84 = scmp.ne.s32.totalorder %s67, %s83
      %p85 = scmp.eq.s32.totalorder %s33, 0
      %p86 = por %p84, %p85
      %s88 = sadd.s32 %s87, 1
      %p91 = scmp.eq.s32.totalorder %s27, 1
      %p92 = scmp.ne.s32.totalorder %s87, %s89
      %p93 = scmp.eq.s32.totalorder %s27, 0
      %p94 = por %p92, %p93
      %p95 = scmp.ne.s32.totalorder %s87, %s89
      %p96 = scmp.eq.s32.totalorder %s32, 1
      %p97 = por %p95, %p96
      %p98 = scmp.ne.s32.totalorder %s89, %s90
      %p99 = scmp.eq.s32.totalorder %s32, 0
      %p100 = por %p98, %p99
      %p101 = scmp.ne.s32.totalorder %s89, %s90
      %p102 = scmp.eq.s32.totalorder %s33, 1
      %p103 = por %p101, %p102
      %p105 = scmp.ne.s32.totalorder %s90, %s104
      %p106 = scmp.eq.s32.totalorder %s33, 0
      %p107 = por %p105, %p106
      %s109 = sadd.s32 %s108, 1
      %p112 = scmp.eq.s32.totalorder %s27, 1
      %p113 = scmp.ne.s32.totalorder %s108, %s110
      %p114 = scmp.eq.s32.totalorder %s27, 0
      %p115 = por %p113, %p114
      %p116 = scmp.ne.s32.totalorder %s108, %s110
      %p117 = scmp.eq.s32.totalorder %s32, 1
      %p118 = por %p116, %p117
      %p119 = scmp.ne.s32.totalorder %s110, %s111
      %p120 = scmp.eq.s32.totalorder %s32, 0
      %p121 = por %p119, %p120
      %p122 = scmp.ne.s32.totalorder %s110, %s111
      %p123 = scmp.eq.s32.totalorder %s33, 1
      %p124 = por %p122, %p123
      %p126 = scmp.ne.s32.totalorder %s111, %s125
      %p127 = scmp.eq.s32.totalorder %s33, 0
      %p128 = por %p126, %p127
      %s130 = sadd.s32 %s129, 1
      %p133 = scmp.eq.s32.totalorder %s27, 1
      %p134 = scmp.ne.s32.totalorder %s129, %s131
      %p135 = scmp.eq.s32.totalorder %s27, 0
      %p136 = por %p134, %p135
      %p137 = scmp.ne.s32.totalorder %s129, %s131
      %p138 = scmp.eq.s32.totalorder %s32, 1
      %p139 = por %p137, %p138
      %p140 = scmp.ne.s32.totalorder %s131, %s132
      %p141 = scmp.eq.s32.totalorder %s32, 0
      %p142 = por %p140, %p141
      %p143 = scmp.ne.s32.totalorder %s131, %s132
      %p144 = scmp.eq.s32.totalorder %s33, 1
      %p145 = por %p143, %p144
      %p147 = scmp.ne.s32.totalorder %s132, %s146
      %p148 = scmp.eq.s32.totalorder %s33, 0
      %p149 = por %p147, %p148
      %s151 = sadd.s32 %s150, 1
      %p154 = scmp.eq.s32.totalorder %s27, 1
      %p155 = scmp.ne.s32.totalorder %s150, %s152
      %p156 = scmp.eq.s32.totalorder %s27, 0
      %p157 = por %p155, %p156
      %p158 = scmp.ne.s32.totalorder %s150, %s152
      %p159 = scmp.eq.s32.totalorder %s32, 1
      %p160 = por %p158, %p159
      %p161 = scmp.ne.s32.totalorder %s152, %s153
      %p162 = scmp.eq.s32.totalorder %s32, 0
      %p163 = por %p161, %p162
      %p164 = scmp.ne.s32.totalorder %s152, %s153
      %p165 = scmp.eq.s32.totalorder %s33, 1
      %p166 = por %p164, %p165
      %p168 = scmp.ne.s32.totalorder %s153, %s167
      %p169 = scmp.eq.s32.totalorder %s33, 0
      %p170 = por %p168, %p169
      %s172 = sadd.s32 %s171, 1
      %p175 = scmp.eq.s32.totalorder %s27, 1
      %p176 = scmp.ne.s32.totalorder %s171, %s173
      %p177 = scmp.eq.s32.totalorder %s27, 0
      %p178 = por %p176, %p177
      %p179 = scmp.ne.s32.totalorder %s171, %s173
      %p180 = scmp.eq.s32.totalorder %s32, 1
      %p181 = por %p179, %p180
      %p182 = scmp.ne.s32.totalorder %s173, %s174
      %p183 = scmp.eq.s32.totalorder %s32, 0
      %p184 = por %p182, %p183
      %p185 = scmp.ne.s32.totalorder %s173, %s174
      %p186 = scmp.eq.s32.totalorder %s33, 1
      %p187 = por %p185, %p186
      %p189 = scmp.ne.s32.totalorder %s174, %s188
      %p190 = scmp.eq.s32.totalorder %s33, 0
      %p191 = por %p189, %p190
      %s193 = sadd.s32 %s192, 1
      %p196 = scmp.eq.s32.totalorder %s27, 1
      %p197 = scmp.ne.s32.totalorder %s192, %s194
      %p198 = scmp.eq.s32.totalorder %s27, 0
      %p199 = por %p197, %p198
      %p200 = scmp.ne.s32.totalorder %s192, %s194
      %p201 = scmp.eq.s32.totalorder %s32, 1
      %p202 = por %p200, %p201
      %p203 = scmp.ne.s32.totalorder %s194, %s195
      %p204 = scmp.eq.s32.totalorder %s32, 0
      %p205 = por %p203, %p204
      %p206 = scmp.ne.s32.totalorder %s194, %s195
      %p207 = scmp.eq.s32.totalorder %s33, 1
      %p208 = por %p206, %p207
      %p210 = scmp.ne.s32.totalorder %s195, %s209
      %p211 = scmp.eq.s32.totalorder %s33, 0
      %p212 = por %p210, %p211
      %s213 = ssub.s32 %s27, %s34
      %p214 = scmp.eq.s32.totalorder %s213, 0
      %s216 = sadd.s32 %s215, 1
      %s217 = scalar_select %p214, %s215, %s216
      %p220 = pneg %p214
      %p221 = scmp.eq.s32.totalorder %s27, 1
      %p222 = por %p220, %p221
      %p223 = scmp.ne.s32.totalorder %s215, %s218
      %p224 = scmp.eq.s32.totalorder %s27, 0
      %p225 = por %p223, %p224
      %p226 = scmp.ne.s32.totalorder %s215, %s218
      %p227 = scmp.eq.s32.totalorder %s32, 1
      %p228 = por %p226, %p227
      %p229 = scmp.ne.s32.totalorder %s218, %s219
      %p230 = scmp.eq.s32.totalorder %s32, 0
      %p231 = por %p229, %p230
      %p232 = scmp.ne.s32.totalorder %s218, %s219
      %p233 = scmp.eq.s32.totalorder %s33, 1
      %p234 = por %p232, %p233
      %p236 = scmp.ne.s32.totalorder %s219, %s235
      %p237 = scmp.eq.s32.totalorder %s33, 0
      %p238 = por %p236, %p237
      %s239 = ssub.s32 %s27, %s34
      %p240 = scmp.eq.s32.totalorder %s239, 0
      %s242 = sadd.s32 %s241, 1
      %s243 = scalar_select %p240, %s241, %s242
      %p246 = pneg %p240
      %p247 = scmp.eq.s32.totalorder %s27, 1
      %p248 = por %p246, %p247
      %p249 = scmp.ne.s32.totalorder %s241, %s244
      %p250 = scmp.eq.s32.totalorder %s27, 0
      %p251 = por %p249, %p250
      %p252 = scmp.ne.s32.totalorder %s241, %s244
      %p253 = scmp.eq.s32.totalorder %s32, 1
      %p254 = por %p252, %p253
      %p255 = scmp.ne.s32.totalorder %s244, %s245
      %p256 = scmp.eq.s32.totalorder %s32, 0
      %p257 = por %p255, %p256
      %p258 = scmp.ne.s32.totalorder %s244, %s245
      %p259 = scmp.eq.s32.totalorder %s33, 1
      %p260 = por %p258, %p259
      %p262 = scmp.ne.s32.totalorder %s245, %s261
      %p263 = scmp.eq.s32.totalorder %s33, 0
      %p264 = por %p262, %p263
      %s265 = ssub.s32 %s27, %s34
      %p266 = scmp.eq.s32.totalorder %s265, 0
      %s268 = sadd.s32 %s267, 1
      %s269 = scalar_select %p266, %s267, %s268
      %p272 = pneg %p266
      %p273 = scmp.eq.s32.totalorder %s27, 1
      %p274 = por %p272, %p273
      %p275 = scmp.ne.s32.totalorder %s267, %s270
      %p276 = scmp.eq.s32.totalorder %s27, 0
      %p277 = por %p275, %p276
      %p278 = scmp.ne.s32.totalorder %s267, %s270
      %p279 = scmp.eq.s32.totalorder %s32, 1
      %p280 = por %p278, %p279
      %p281 = scmp.ne.s32.totalorder %s270, %s271
      %p282 = scmp.eq.s32.totalorder %s32, 0
      %p283 = por %p281, %p282
      %p284 = scmp.ne.s32.totalorder %s270, %s271
      %p285 = scmp.eq.s32.totalorder %s33, 1
      %p286 = por %p284, %p285
      %p288 = scmp.ne.s32.totalorder %s271, %s287
      %p289 = scmp.eq.s32.totalorder %s33, 0
      %p290 = por %p288, %p289
      %p291 = scmp.le.s32.totalorder 1, %s27
      %p292 = scmp.lt.s32.totalorder %s27, 3
      %p293 = pnand %p291, %p292
      %p294 = pneg %p293
      // Predicated region
      $region9: #{tpu_custom_call.1} parent=5 // pred_check
        _
      $region10: #{tpu_custom_call.1} parent=5 // pred_check_branch
        %296 = sbr.rel (%p293) target = $region12
      $region11: #{tpu_custom_call.1} parent=5 // pred_region
        %s297 = ssub.s32 %s27, 1
        // Predicated region
        $region13: #{tpu_custom_call.1} parent=11 // pred_check
          %p298 = pneg %p100
        $region14: #{tpu_custom_call.1} parent=11 // pred_check_branch
          %300 = sbr.rel (%p298) target = $region16
        $region15: #{tpu_custom_call.1} parent=11 // pred_region
          _
        $region16: #{tpu_custom_call.1} parent=11 // pred_fallthru
          _
        // Predicated region
        $region17: #{tpu_custom_call.1} parent=11 // pred_check
          %p301 = pneg %p121
        $region18: #{tpu_custom_call.1} parent=11 // pred_check_branch
          %303 = sbr.rel (%p301) target = $region20
        $region19: #{tpu_custom_call.1} parent=11 // pred_region
          _
        $region20: #{tpu_custom_call.1} parent=11 // pred_fallthru
          _
        // Predicated region
        $region21: #{tpu_custom_call.1} parent=11 // pred_check
          %p304 = pneg %p142
        $region22: #{tpu_custom_call.1} parent=11 // pred_check_branch
          %306 = sbr.rel (%p304) target = $region24
        $region23: #{tpu_custom_call.1} parent=11 // pred_region
          _
        $region24: #{tpu_custom_call.1} parent=11 // pred_fallthru
          _
        // Predicated region
        $region25: #{tpu_custom_call.1} parent=11 // pred_check
          %p307 = pneg %p163
        $region26: #{tpu_custom_call.1} parent=11 // pred_check_branch
          %309 = sbr.rel (%p307) target = $region28
        $region27: #{tpu_custom_call.1} parent=11 // pred_region
          _
        $region28: #{tpu_custom_call.1} parent=11 // pred_fallthru
          _
        // Predicated region
        $region29: #{tpu_custom_call.1} parent=11 // pred_check
          %p310 = pneg %p184
        $region30: #{tpu_custom_call.1} parent=11 // pred_check_branch
          %312 = sbr.rel (%p310) target = $region32
        $region31: #{tpu_custom_call.1} parent=11 // pred_region
          %s314 = ssub.s32 4608, 4608
          %315 = vsyncadd [#allocation6], %s314
          %s316 = sshll.u32 [#allocation5], 4
          %s317 = int_to_ptr.vmem [resolvable:$true] %s316
          %322 = dma.hbm_to_vmem [thread:$0]  %s6, 4608, %s317, [#allocation6], 128, 128, 8
        $region32: #{tpu_custom_call.1} parent=11 // pred_fallthru
          _
        // Predicated region
        $region33: #{tpu_custom_call.1} parent=11 // pred_check
          %p323 = pneg %p205
        $region34: #{tpu_custom_call.1} parent=11 // pred_check_branch
          %325 = sbr.rel (%p323) target = $region36
        $region35: #{tpu_custom_call.1} parent=11 // pred_region
          _
        $region36: #{tpu_custom_call.1} parent=11 // pred_fallthru
          _
      $region12: #{tpu_custom_call.1} parent=5 // pred_fallthru
        _
      %p326 = scmp.lt.s32.totalorder %s27, 2
      // Predicated region
      $region37: #{tpu_custom_call.1} parent=5 // pred_check
        %p327 = pneg %p326
      $region38: #{tpu_custom_call.1} parent=5 // pred_check_branch
        %329 = sbr.rel (%p327) target = $region40
      $region39: #{tpu_custom_call.1} parent=5 // pred_region
        // Predicated region
        $region41: #{tpu_custom_call.1} parent=39 // pred_check
          %p330 = pneg %p47
        $region42: #{tpu_custom_call.1} parent=39 // pred_check_branch
          %332 = sbr.rel (%p330) target = $region44
        $region43: #{tpu_custom_call.1} parent=39 // pred_region
          %s333 = sand.u32 %s37, 1
          %s334 = scalar_lea.sflag [#allocation3], %s333
          %s335 = sand.u32 %s37, 1
          %s336 = smul.addr %s335, 32
          %s337 = scalar_lea.vmem [#allocation2], %s336
          %s338 = smul.u32 2, %s27
          %s340 = ssub.s32 512, 512
          %341 = vsyncadd %s334, %s340
          %s342 = smul.addr %s338, 2
          %s343 = smul.addr %s342, 128
          %s344 = scalar_lea.hbm %s0, %s343
          %s345 = sshll.u32 %s337, 4
          %s346 = int_to_ptr.vmem [resolvable:$true] %s345
          %351 = dma.hbm_to_vmem [thread:$0]  %s344, 512, %s346, %s334, 256, 256, 16
        $region44: #{tpu_custom_call.1} parent=39 // pred_fallthru
          _
        // Predicated region
        $region45: #{tpu_custom_call.1} parent=39 // pred_check
          %p352 = pneg %p73
        $region46: #{tpu_custom_call.1} parent=39 // pred_check_branch
          %354 = sbr.rel (%p352) target = $region48
        $region47: #{tpu_custom_call.1} parent=39 // pred_region
          %s355 = smul.u32 2, %s27
          %p356 = scmp.lt.s32.totalorder %s355, 3
          %s357 = scalar_select %p356, %s355, 3
          %s358 = smul.addr %s357, 8
          %s359 = scalar_lea.vmem %s1, %s358
          %s360 = smul.u32 2, %s27
        $region48: #{tpu_custom_call.1} parent=39 // pred_fallthru
          _
      $region40: #{tpu_custom_call.1} parent=5 // pred_fallthru
        _
      %p361 = scmp.le.s32.totalorder 1, %s27
      %p362 = scmp.lt.s32.totalorder %s27, 3
      %p363 = pnand %p361, %p362
      %p364 = pneg %p363
      // Predicated region
      $region49: #{tpu_custom_call.1} parent=5 // pred_check
        _
      $region50: #{tpu_custom_call.1} parent=5 // pred_check_branch
        %366 = sbr.rel (%p363) target = $region52
      $region51: #{tpu_custom_call.1} parent=5 // pred_region
        %s367 = ssub.s32 %s27, 1
        %s368 = sand.u32 %s40, 1
        %s369 = scalar_lea.sflag [#allocation3], %s368
        %s370 = sand.u32 %s40, 1
        %s371 = smul.addr %s370, 32
        %s372 = scalar_lea.vmem [#allocation2], %s371
        // Predicated region
        $region53: #{tpu_custom_call.1} parent=51 // pred_check
          %p373 = pneg %p53
        $region54: #{tpu_custom_call.1} parent=51 // pred_check_branch
          %375 = sbr.rel (%p373) target = $region56
        $region55: #{tpu_custom_call.1} parent=51 // pred_region
          %376 = dma.done %s369, 512
        $region56: #{tpu_custom_call.1} parent=51 // pred_fallthru
          _
        // Predicated region
        $region57: #{tpu_custom_call.1} parent=51 // pred_check
          %p377 = pneg %p184
        $region58: #{tpu_custom_call.1} parent=51 // pred_check_branch
          %379 = sbr.rel (%p377) target = $region60
        $region59: #{tpu_custom_call.1} parent=51 // pred_region
          %380 = dma.done [#allocation6], 4608
        $region60: #{tpu_custom_call.1} parent=51 // pred_fallthru
          _
        %s381 = sand.u32 %s40, 1
        %s382 = scalar_lea.sflag [#allocation3], %s381
        %s383 = sand.u32 %s40, 1
        %s384 = smul.addr %s383, 32
        %s385 = scalar_lea.vmem [#allocation2], %s384
        %p386 = pneg %p53
        %p387 = pneg %p50
        %s388 = smul.u32 2, %s32
        %p389 = scmp.lt.s32.totalorder %s388, 3
        %s390 = scalar_select %p389, %s388, 3
        %s391 = smul.addr %s390, 8
        %s392 = scalar_lea.vmem %s1, %s391
        %p393 = pneg %p79
        %p394 = pneg %p76
        %p395 = pneg %p100
        %p396 = pneg %p97
        %p397 = pneg %p121
        %p398 = pneg %p118
        %p399 = pneg %p142
        %p400 = pneg %p139
        %p401 = pneg %p163
        %p402 = pneg %p160
        %p403 = pneg %p184
        %p404 = pneg %p181
        %p405 = pneg %p205
        %p406 = pneg %p202
        %p407 = pneg %p231
        %p408 = pneg %p228
        %s409 = sand.u32 %s218, 1
        %s410 = scalar_lea.sflag [#allocation4], %s409
        %s411 = sand.u32 %s218, 1
        %s412 = smul.addr %s411, 16
        %s413 = scalar_lea.vmem [#allocation7], %s412
        %p414 = pneg %p257
        %p415 = pneg %p254
        %s416 = sand.u32 %s32, 1
        %s417 = scalar_lea.sflag [#allocation9], %s416
        %s418 = sand.u32 %s244, 1
        %s419 = smul.addr %s418, 8
        %s420 = scalar_lea.vmem [#allocation8], %s419
        %p421 = pneg %p283
        %p422 = pneg %p280
        %s423 = sand.u32 %s32, 1
        %s424 = scalar_lea.sflag [#allocation9], %s423
        %s425 = sand.u32 %s270, 1
        %s426 = smul.addr %s425, 16
        %s427 = scalar_lea.vmem [#allocation10], %s426
        %s428 = smul.u32 2, %s32
        %s429 = smul.u32 2, %s32
        %p430 = scmp.lt.s32.totalorder %s429, 3
        %s431 = scalar_select %p430, %s429, 3
        %s432 = smul.addr %s431, 8
        %s433 = scalar_lea.vmem %s1, %s432
        %s434 = smul.u32 2, %s32
        %s435 = smul.u32 2, %s32
        %s436 = smul.u32 2, %s32
        %s437 = smul.u32 2, %s32
        %v439 = vld [vmem:[%s433] sm:$0xff]
        %v440 = vld [vmem:[%s433 + $0x8] sm:$0xff]
        %v441 = vld [vmem:[%s2] sm:$0x7f]
        %v442 = vld [vmem:[%s3] sm:$0x1]
        %v444 = vlaneseq
        %v445 = vshrl.u32 %v444, 7
        %v446 = vsub.s32 0, %v445
        %v447 = vrot.slane %v442, %v446
        %vm449 = vcmask 56320
        %v451 = vsel %vm449, %v439, 0
        %v454 = vsel %vm449, %v440, 0
        %vm456 = vcmask 1046528
        %v458 = vsel %vm456, %v441, 0
        %460 = vmatprep.subr.mxu0 0.0
        %461 = vmatpush1.msra.mxu0 0.0
        %462 = vmatprep.subr.mxu0 0.0
        %463 = vmatpush1.msra.mxu0 0.0
        %464 = vmatprep.subr.mxu0 0.0
        %465 = vmatpush1.msra.mxu0 0.0
        %466 = vmatprep.subr.mxu0 0.0
        %467 = vmatpush1.msra.mxu0 0.0
        %468 = vmatprep.subr.mxu0 0.0
        %469 = vmatpush1.msra.mxu0 0.0
        %470 = vmatprep.subr.mxu0 0.0
        %471 = vmatpush1.msra.mxu0 0.0
        %472 = vmatprep.subr.mxu0 0.0
        %473 = vmatpush1.msra.mxu0 0.0
        %474 = vmatprep.subr.mxu0 0.0
        %475 = vmatpush1.msra.mxu0 0.0
        %476 = vmatprep.subr.mxu0 0.0
        %477 = vmatpush1.msra.mxu0 0.0
        %478 = vmatprep.subr.mxu0 0.0
        %479 = vmatpush1.msra.mxu0 0.0
        %480 = vmatprep.subr.mxu0 0.0
        %481 = vmatpush1.msra.mxu0 0.0
        %482 = vmatprep.subr.mxu0 0.0
        %483 = vmatpush1.msra.mxu0 0.0
        %484 = vmatprep.subr.mxu0 0.0
        %485 = vmatpush1.msra.mxu0 0.0
        %486 = vmatprep.subr.mxu0 0.0
        %487 = vmatpush1.msra.mxu0 0.0
        %488 = vmatprep.subr.mxu0 0.0
        %489 = vmatpush1.msra.mxu0 0.0
        %490 = vmatprep.subr.mxu0 0.0
        %491 = vmatpush1.msra.mxu0 %v458
        %492 = vmatprep.subr.mxu0 0.0
        %493 = vmatpush2.msra.mxu0 0.0
        %494 = vmatprep.subr.mxu0 0.0
        %495 = vmatpush2.msra.mxu0 0.0
        %496 = vmatprep.subr.mxu0 0.0
        %497 = vmatpush2.msra.mxu0 0.0
        %498 = vmatprep.subr.mxu0 0.0
        %499 = vmatpush2.msra.mxu0 0.0
        %500 = vmatprep.subr.mxu0 0.0
        %501 = vmatpush2.msra.mxu0 0.0
        %502 = vmatprep.subr.mxu0 0.0
        %503 = vmatpush2.msra.mxu0 0.0
        %504 = vmatprep.subr.mxu0 0.0
        %505 = vmatpush2.msra.mxu0 0.0
        %506 = vmatprep.subr.mxu0 0.0
        %507 = vmatpush2.msra.mxu0 0.0
        %508 = vmatprep.subr.mxu0 0.0
        %509 = vmatpush2.msra.mxu0 0.0
        %510 = vmatprep.subr.mxu0 0.0
        %511 = vmatpush2.msra.mxu0 0.0
        %512 = vmatprep.subr.mxu0 0.0
        %513 = vmatpush2.msra.mxu0 0.0
        %514 = vmatprep.subr.mxu0 0.0
        %515 = vmatpush2.msra.mxu0 0.0
        %516 = vmatprep.subr.mxu0 0.0
        %517 = vmatpush2.msra.mxu0 0.0
        %518 = vmatprep.subr.mxu0 0.0
        %519 = vmatpush2.msra.mxu0 0.0
        %520 = vmatprep.subr.mxu0 0.0
        %521 = vmatpush2.msra.mxu0 0.0
        %522 = vmatprep.subr.mxu0 0.0
        %523 = vmatpush2.msra.mxu0 0.0
        %524 = vmatprep.mubr.f32.mxu0 0.0
        %525 = vmatmul.mubr.f32.gmra.mxu0 %v451
        %v526 = vpop.f32.mrf.mxu0
        %v527 = vadd.f32 %v447, %v526
        %v528 = vpop.f32.mrf.mxu0
        %529 = vmatprep.mubr.f32.mxu0 0.0
        %530 = vmatmul.mubr.f32.gmra.mxu0 %v454
        %v531 = vpop.f32.mrf.mxu0
        %v532 = vadd.f32 %v447, %v531
        %v533 = vpop.f32.mrf.mxu0
        %534 = vdwg.mxu0
        %v535 = vmax.f32 %v527, 0.0
        %v536 = vmax.f32 %v532, 0.0
        %v537 = vld [vmem:[%s4] sm:$0xff]
        %v538 = vld [vmem:[%s4 + $0x8] sm:$0xff]
        %v539 = vld [vmem:[%s4 + $0x10] sm:$0xff]
        %v540 = vld [vmem:[%s4 + $0x18] sm:$0xff]
        %v541 = vld [vmem:[%s5] sm:$0x1]
        %v543 = vlaneseq
        %v544 = vshrl.u32 %v543, 7
        %v545 = vsub.s32 0, %v544
        %v546 = vrot.slane %v541, %v545
        %vm548 = vcmask 261120
        %v550 = vsel %vm548, %v535, 0
        %v553 = vsel %vm548, %v536, 0
        %555 = vmatprep.subr.mxu0 0.0
        %556 = vmatpush1.msra.mxu0 0.0
        %557 = vmatprep.subr.mxu0 0.0
        %558 = vmatpush1.msra.mxu0 0.0
        %559 = vmatprep.subr.mxu0 0.0
        %560 = vmatpush1.msra.mxu0 0.0
        %561 = vmatprep.subr.mxu0 0.0
        %562 = vmatpush1.msra.mxu0 0.0
        %563 = vmatprep.subr.mxu0 0.0
        %564 = vmatpush1.msra.mxu0 0.0
        %565 = vmatprep.subr.mxu0 0.0
        %566 = vmatpush1.msra.mxu0 0.0
        %567 = vmatprep.subr.mxu0 0.0
        %568 = vmatpush1.msra.mxu0 0.0
        %569 = vmatprep.subr.mxu0 0.0
        %570 = vmatpush1.msra.mxu0 0.0
        %571 = vmatprep.subr.mxu0 0.0
        %572 = vmatpush1.msra.mxu0 0.0
        %573 = vmatprep.subr.mxu0 0.0
        %574 = vmatpush1.msra.mxu0 0.0
        %575 = vmatprep.subr.mxu0 0.0
        %576 = vmatpush1.msra.mxu0 0.0
        %577 = vmatprep.subr.mxu0 0.0
        %578 = vmatpush1.msra.mxu0 0.0
        %579 = vmatprep.subr.mxu0 0.0
        %580 = vmatpush1.msra.mxu0 %v540
        %581 = vmatprep.subr.mxu0 0.0
        %582 = vmatpush1.msra.mxu0 %v539
        %583 = vmatprep.subr.mxu0 0.0
        %584 = vmatpush1.msra.mxu0 %v538
        %585 = vmatprep.subr.mxu0 0.0
        %586 = vmatpush1.msra.mxu0 %v537
        %587 = vmatprep.subr.mxu0 0.0
        %588 = vmatpush2.msra.mxu0 0.0
        %589 = vmatprep.subr.mxu0 0.0
        %590 = vmatpush2.msra.mxu0 0.0
        %591 = vmatprep.subr.mxu0 0.0
        %592 = vmatpush2.msra.mxu0 0.0
        %593 = vmatprep.subr.mxu0 0.0
        %594 = vmatpush2.msra.mxu0 0.0
        %595 = vmatprep.subr.mxu0 0.0
        %596 = vmatpush2.msra.mxu0 0.0
        %597 = vmatprep.subr.mxu0 0.0
        %598 = vmatpush2.msra.mxu0 0.0
        %599 = vmatprep.subr.mxu0 0.0
        %600 = vmatpush2.msra.mxu0 0.0
        %601 = vmatprep.subr.mxu0 0.0
        %602 = vmatpush2.msra.mxu0 0.0
        %603 = vmatprep.subr.mxu0 0.0
        %604 = vmatpush2.msra.mxu0 0.0
        %605 = vmatprep.subr.mxu0 0.0
        %606 = vmatpush2.msra.mxu0 0.0
        %607 = vmatprep.subr.mxu0 0.0
        %608 = vmatpush2.msra.mxu0 0.0
        %609 = vmatprep.subr.mxu0 0.0
        %610 = vmatpush2.msra.mxu0 0.0
        %611 = vmatprep.subr.mxu0 0.0
        %612 = vmatpush2.msra.mxu0 0.0
        %613 = vmatprep.subr.mxu0 0.0
        %614 = vmatpush2.msra.mxu0 0.0
        %615 = vmatprep.subr.mxu0 0.0
        %616 = vmatpush2.msra.mxu0 0.0
        %617 = vmatprep.subr.mxu0 0.0
        %618 = vmatpush2.msra.mxu0 0.0
        %619 = vmatprep.mubr.f32.mxu0 0.0
        %620 = vmatmul.mubr.f32.gmra.mxu0 %v550
        %v621 = vpop.f32.mrf.mxu0
        %v622 = vadd.f32 %v546, %v621
        %v623 = vpop.f32.mrf.mxu0
        %624 = vmatprep.mubr.f32.mxu0 0.0
        %625 = vmatmul.mubr.f32.gmra.mxu0 %v553
        %v626 = vpop.f32.mrf.mxu0
        %v627 = vadd.f32 %v546, %v626
        %v628 = vpop.f32.mrf.mxu0
        %629 = vdwg.mxu0
        %v630 = vmax.f32 %v622, 0.0
        %v631 = vmax.f32 %v627, 0.0
        %632 = vst.msk [vmem:[%s413] sm:$0xff] %vm548, %v630
        %633 = vst.msk [vmem:[%s413 + $0x8] sm:$0xff] %vm548, %v631
        %v634 = vld [vmem:[%s372] sm:$0xff]
        %v635 = vld [vmem:[%s372 + $0x8] sm:$0xff]
        %v636 = vld [vmem:[%s372 + $0x10] sm:$0xff]
        %v637 = vld [vmem:[%s372 + $0x18] sm:$0xff]
        %v638 = vpack.c.bf16 %v636, %v634
        %v639 = vpack.c.bf16 %v637, %v635
        %v640 = vld [vmem:[#allocation5] sm:$0xff]
        %v641 = vld [vmem:[#allocation5 + $0x8] sm:$0xff]
        %v642 = vld [vmem:[#allocation5 + $0x10] sm:$0xff]
        %v643 = vld [vmem:[#allocation5 + $0x18] sm:$0xff]
        %v644 = vld [vmem:[#allocation5 + $0x20] sm:$0xff]
        %v645 = vld [vmem:[#allocation5 + $0x28] sm:$0xff]
        %v646 = vld [vmem:[#allocation5 + $0x30] sm:$0xff]
        %v647 = vld [vmem:[#allocation5 + $0x38] sm:$0xff]
        %v648 = vld [vmem:[#allocation5 + $0x40] sm:$0xff]
        %v649 = vld [vmem:[#allocation5 + $0x48] sm:$0xff]
        %v650 = vld [vmem:[#allocation5 + $0x50] sm:$0xff]
        %v651 = vld [vmem:[#allocation5 + $0x58] sm:$0xff]
        %v652 = vld [vmem:[#allocation5 + $0x60] sm:$0xff]
        %v653 = vld [vmem:[#allocation5 + $0x68] sm:$0xff]
        %v654 = vld [vmem:[#allocation5 + $0x70] sm:$0xff]
        %v655 = vld [vmem:[#allocation5 + $0x78] sm:$0xff]
        %v656 = vld [vmem:[#allocation5 + $0x80] sm:$0xff]
        %v657 = vld [vmem:[#allocation5 + $0x88] sm:$0xff]
        %v658 = vld [vmem:[#allocation5 + $0x90] sm:$0xff]
        %v659 = vld [vmem:[#allocation5 + $0x98] sm:$0xff]
        %v660 = vld [vmem:[#allocation5 + $0xa0] sm:$0xff]
        %v661 = vld [vmem:[#allocation5 + $0xa8] sm:$0xff]
        %v662 = vld [vmem:[#allocation5 + $0xb0] sm:$0xff]
        %v663 = vld [vmem:[#allocation5 + $0xb8] sm:$0xff]
        %v664 = vld [vmem:[#allocation5 + $0xc0] sm:$0xff]
        %v665 = vld [vmem:[#allocation5 + $0xc8] sm:$0xff]
        %v666 = vld [vmem:[#allocation5 + $0xd0] sm:$0xff]
        %v667 = vld [vmem:[#allocation5 + $0xd8] sm:$0xff]
        %v668 = vld [vmem:[#allocation5 + $0xe0] sm:$0xff]
        %v669 = vld [vmem:[#allocation5 + $0xe8] sm:$0xff]
        %v670 = vld [vmem:[#allocation5 + $0xf0] sm:$0xff]
        %v671 = vld [vmem:[#allocation5 + $0xf8] sm:$0xff]
        %v672 = vpack.c.bf16 %v631, %v630
        %v673 = vld [vmem:[#allocation5 + $0x100] sm:$0xff]
        %v674 = vld [vmem:[#allocation5 + $0x108] sm:$0xff]
        %v675 = vld [vmem:[#allocation5 + $0x110] sm:$0xff]
        %v676 = vld [vmem:[#allocation5 + $0x118] sm:$0xff]
        %v681 = vunpack.c.l.b16 %v673
        %v682 = vunpack.c.h.b16 %v673
        %v683 = vunpack.c.l.b16 %v674
        %v684 = vunpack.c.h.b16 %v674
        %v685 = vunpack.c.l.b16 %v675
        %v686 = vunpack.c.h.b16 %v675
        %v687 = vunpack.c.l.b16 %v676
        %v688 = vunpack.c.h.b16 %v676
        %v689 = vpack.c.b16 %v683, %v681
        %v690 = vpack.c.b16 %v684, %v682
        %v691 = vpack.c.b16 %v687, %v685
        %v692 = vpack.c.b16 %v688, %v686
        %v698 = vsel %vm548, %v672, 0
        %700 = vmatprep.subr.bf16.mxu0 0
        %701 = vmatpush1.bf16.msra.mxu0 0
        %702 = vmatprep.subr.bf16.mxu0 0
        %703 = vmatpush1.bf16.msra.mxu0 0
        %704 = vmatprep.subr.bf16.mxu0 0
        %705 = vmatpush1.bf16.msra.mxu0 0
        %706 = vmatprep.subr.bf16.mxu0 0
        %707 = vmatpush1.bf16.msra.mxu0 0
        %708 = vmatprep.subr.bf16.mxu0 0
        %709 = vmatpush1.bf16.msra.mxu0 0
        %710 = vmatprep.subr.bf16.mxu0 0
        %711 = vmatpush1.bf16.msra.mxu0 0
        %712 = vmatprep.subr.bf16.mxu0 %v692
        %713 = vmatpush1.bf16.msra.mxu0 %v691
        %714 = vmatprep.subr.bf16.mxu0 %v690
        %715 = vmatpush1.bf16.msra.mxu0 %v689
        %716 = vmatprep.subr.bf16.mxu0 0
        %717 = vmatpush2.bf16.msra.mxu0 0
        %718 = vmatprep.subr.bf16.mxu0 0
        %719 = vmatpush2.bf16.msra.mxu0 0
        %720 = vmatprep.subr.bf16.mxu0 0
        %721 = vmatpush2.bf16.msra.mxu0 0
        %722 = vmatprep.subr.bf16.mxu0 0
        %723 = vmatpush2.bf16.msra.mxu0 0
        %724 = vmatprep.subr.bf16.mxu0 0
        %725 = vmatpush2.bf16.msra.mxu0 0
        %726 = vmatprep.subr.bf16.mxu0 0
        %727 = vmatpush2.bf16.msra.mxu0 0
        %728 = vmatprep.subr.bf16.mxu0 0
        %729 = vmatpush2.bf16.msra.mxu0 0
        %730 = vmatprep.subr.bf16.mxu0 0
        %731 = vmatpush2.bf16.msra.mxu0 0
        %732 = vmatprep.mubr.bf16.mxu0 0
        %733 = vmatmul.mubr.bf16.gmra.mxu0 %v698
        %v734 = vpop.f32.mrf.mxu0
        %v735 = vadd.f32 0.0, %v734
        %v736 = vpop.f32.mrf.mxu0
        %v737 = vadd.f32 0.0, %v736
        %v738 = vpop.f32.mrf.mxu0
        %v739 = vadd.f32 0.0, %v738
        %v740 = vpop.f32.mrf.mxu0
        %v741 = vadd.f32 0.0, %v740
        %742 = vdwg.mxu0
        %v775 = vunpack.c.l.b16 %v640
        %v776 = vunpack.c.h.b16 %v640
        %v777 = vunpack.c.l.b16 %v641
        %v778 = vunpack.c.h.b16 %v641
        %v779 = vunpack.c.l.b16 %v642
        %v780 = vunpack.c.h.b16 %v642
        %v781 = vunpack.c.l.b16 %v643
        %v782 = vunpack.c.h.b16 %v643
        %v783 = vunpack.c.l.b16 %v644
        %v784 = vunpack.c.h.b16 %v644
        %v785 = vunpack.c.l.b16 %v645
        %v786 = vunpack.c.h.b16 %v645
        %v787 = vunpack.c.l.b16 %v646
        %v788 = vunpack.c.h.b16 %v646
        %v789 = vunpack.c.l.b16 %v647
        %v790 = vunpack.c.h.b16 %v647
        %v791 = vunpack.c.l.b16 %v648
        %v792 = vunpack.c.h.b16 %v648
        %v793 = vunpack.c.l.b16 %v649
        %v794 = vunpack.c.h.b16 %v649
        %v795 = vunpack.c.l.b16 %v650
        %v796 = vunpack.c.h.b16 %v650
        %v797 = vunpack.c.l.b16 %v651
        %v798 = vunpack.c.h.b16 %v651
        %v799 = vunpack.c.l.b16 %v652
        %v800 = vunpack.c.h.b16 %v652
        %v801 = vunpack.c.l.b16 %v653
        %v802 = vunpack.c.h.b16 %v653
        %v803 = vunpack.c.l.b16 %v654
        %v804 = vunpack.c.h.b16 %v654
        %v805 = vunpack.c.l.b16 %v655
        %v806 = vunpack.c.h.b16 %v655
        %v807 = vunpack.c.l.b16 %v656
        %v808 = vunpack.c.h.b16 %v656
        %v809 = vunpack.c.l.b16 %v657
        %v810 = vunpack.c.h.b16 %v657
        %v811 = vunpack.c.l.b16 %v658
        %v812 = vunpack.c.h.b16 %v658
        %v813 = vunpack.c.l.b16 %v659
        %v814 = vunpack.c.h.b16 %v659
        %v815 = vunpack.c.l.b16 %v660
        %v816 = vunpack.c.h.b16 %v660
        %v817 = vunpack.c.l.b16 %v661
        %v818 = vunpack.c.h.b16 %v661
        %v819 = vunpack.c.l.b16 %v662
        %v820 = vunpack.c.h.b16 %v662
        %v821 = vunpack.c.l.b16 %v663
        %v822 = vunpack.c.h.b16 %v663
        %v823 = vunpack.c.l.b16 %v664
        %v824 = vunpack.c.h.b16 %v664
        %v825 = vunpack.c.l.b16 %v665
        %v826 = vunpack.c.h.b16 %v665
        %v827 = vunpack.c.l.b16 %v666
        %v828 = vunpack.c.h.b16 %v666
        %v829 = vunpack.c.l.b16 %v667
        %v830 = vunpack.c.h.b16 %v667
        %v831 = vunpack.c.l.b16 %v668
        %v832 = vunpack.c.h.b16 %v668
        %v833 = vunpack.c.l.b16 %v669
        %v834 = vunpack.c.h.b16 %v669
        %v835 = vunpack.c.l.b16 %v670
        %v836 = vunpack.c.h.b16 %v670
        %v837 = vunpack.c.l.b16 %v671
        %v838 = vunpack.c.h.b16 %v671
        %v839 = vpack.c.b16 %v777, %v775
        %v840 = vpack.c.b16 %v778, %v776
        %v841 = vpack.c.b16 %v781, %v779
        %v842 = vpack.c.b16 %v782, %v780
        %v843 = vpack.c.b16 %v785, %v783
        %v844 = vpack.c.b16 %v786, %v784
        %v845 = vpack.c.b16 %v789, %v787
        %v846 = vpack.c.b16 %v790, %v788
        %v847 = vpack.c.b16 %v793, %v791
        %v848 = vpack.c.b16 %v794, %v792
        %v849 = vpack.c.b16 %v797, %v795
        %v850 = vpack.c.b16 %v798, %v796
        %v851 = vpack.c.b16 %v801, %v799
        %v852 = vpack.c.b16 %v802, %v800
        %v853 = vpack.c.b16 %v805, %v803
        %v854 = vpack.c.b16 %v806, %v804
        %v855 = vpack.c.b16 %v809, %v807
        %v856 = vpack.c.b16 %v810, %v808
        %v857 = vpack.c.b16 %v813, %v811
        %v858 = vpack.c.b16 %v814, %v812
        %v859 = vpack.c.b16 %v817, %v815
        %v860 = vpack.c.b16 %v818, %v816
        %v861 = vpack.c.b16 %v821, %v819
        %v862 = vpack.c.b16 %v822, %v820
        %v863 = vpack.c.b16 %v825, %v823
        %v864 = vpack.c.b16 %v826, %v824
        %v865 = vpack.c.b16 %v829, %v827
        %v866 = vpack.c.b16 %v830, %v828
        %v867 = vpack.c.b16 %v833, %v831
        %v868 = vpack.c.b16 %v834, %v832
        %v869 = vpack.c.b16 %v837, %v835
        %v870 = vpack.c.b16 %v838, %v836
        %903 = vmatprep.subr.bf16.mxu0 %v854
        %904 = vmatpush1.bf16.msra.mxu0 %v853
        %905 = vmatprep.subr.bf16.mxu0 %v852
        %906 = vmatpush1.bf16.msra.mxu0 %v851
        %907 = vmatprep.subr.bf16.mxu0 %v850
        %908 = vmatpush1.bf16.msra.mxu0 %v849
        %909 = vmatprep.subr.bf16.mxu0 %v848
        %910 = vmatpush1.bf16.msra.mxu0 %v847
        %911 = vmatprep.subr.bf16.mxu0 %v846
        %912 = vmatpush1.bf16.msra.mxu0 %v845
        %913 = vmatprep.subr.bf16.mxu0 %v844
        %914 = vmatpush1.bf16.msra.mxu0 %v843
        %915 = vmatprep.subr.bf16.mxu0 %v842
        %916 = vmatpush1.bf16.msra.mxu0 %v841
        %917 = vmatprep.subr.bf16.mxu0 %v840
        %918 = vmatpush1.bf16.msra.mxu0 %v839
        %919 = vmatprep.subr.bf16.mxu0 %v870
        %920 = vmatpush2.bf16.msra.mxu0 %v869
        %921 = vmatprep.subr.bf16.mxu0 %v868
        %922 = vmatpush2.bf16.msra.mxu0 %v867
        %923 = vmatprep.subr.bf16.mxu0 %v866
        %924 = vmatpush2.bf16.msra.mxu0 %v865
        %925 = vmatprep.subr.bf16.mxu0 %v864
        %926 = vmatpush2.bf16.msra.mxu0 %v863
        %927 = vmatprep.subr.bf16.mxu0 %v862
        %928 = vmatpush2.bf16.msra.mxu0 %v861
        %929 = vmatprep.subr.bf16.mxu0 %v860
        %930 = vmatpush2.bf16.msra.mxu0 %v859
        %931 = vmatprep.subr.bf16.mxu0 %v858
        %932 = vmatpush2.bf16.msra.mxu0 %v857
        %933 = vmatprep.subr.bf16.mxu0 %v856
        %934 = vmatpush2.bf16.msra.mxu0 %v855
        %935 = vmatprep.mubr.bf16.mxu0 %v639
        %936 = vmatmul.mubr.bf16.gmra.mxu0 %v638
        %v937 = vpop.f32.mrf.mxu0
        %v938 = vadd.f32 %v735, %v937
        %v939 = vpop.f32.mrf.mxu0
        %v940 = vadd.f32 %v737, %v939
        %v941 = vpop.f32.mrf.mxu0
        %v942 = vadd.f32 %v739, %v941
        %v943 = vpop.f32.mrf.mxu0
        %v944 = vadd.f32 %v741, %v943
        %945 = vdwg.mxu0
        %v946 = vpack.c.bf16 %v942, %v938
        %v948 = vunpack.c.l.b16 %v946
        %v949 = vunpack.c.h.b16 %v946
        %v950 = vpack.c.b16 %v948, %v948
        %v951 = vpack.c.b16 %v949, %v949
        %954 = vst [vmem:[%s420] sm:$0xf] %v950
        %955 = vst [vmem:[%s420 + $0x4] sm:$0xf] %v951
        %v956 = vld [vmem:[%s7] sm:$0x1]
        %v958 = vlaneseq
        %v959 = vshrl.u32 %v958, 7
        %v960 = vsub.s32 0, %v959
        %v961 = vrot.slane %v956, %v960
        %v963 = vadd.f32 %v940, %v961
        %v964 = vadd.f32 %v944, %v961
        %965 = vst [vmem:[%s427] sm:$0xff] %v963
        %966 = vst [vmem:[%s427 + $0x8] sm:$0xff] %v964
        %s967 = sand.u32 %s218, 1
        %s968 = scalar_lea.sflag [#allocation4], %s967
        %s969 = sand.u32 %s218, 1
        %s970 = smul.addr %s969, 16
        %s971 = scalar_lea.vmem [#allocation7], %s970
        %s972 = sand.u32 %s32, 1
        %s973 = scalar_lea.sflag [#allocation9], %s972
        %s974 = sand.u32 %s244, 1
        %s975 = smul.addr %s974, 8
        %s976 = scalar_lea.vmem [#allocation8], %s975
        %s977 = sand.u32 %s32, 1
        %s978 = scalar_lea.sflag [#allocation9], %s977
        %s979 = sand.u32 %s270, 1
        %s980 = smul.addr %s979, 16
        %s981 = scalar_lea.vmem [#allocation10], %s980
        // Predicated region
        $region61: #{tpu_custom_call.1} parent=51 // pred_check
          %p982 = pneg %p228
        $region62: #{tpu_custom_call.1} parent=51 // pred_check_branch
          %984 = sbr.rel (%p982) target = $region64
        $region63: #{tpu_custom_call.1} parent=51 // pred_region
          %s985 = smul.u32 2, %s32
          %s987 = ssub.s32 256, 256
          %988 = vsyncadd %s968, %s987
          %s989 = smul.addr %s985, 128
          %s990 = scalar_lea.hbm %s8, %s989
          %s991 = sshll.u32 %s971, 4
          %s992 = int_to_ptr.vmem [resolvable:$true] %s991
          %997 = dma.vmem_to_hbm [thread:$0]  %s992, 256, %s990, %s968, 128, 128, 8
        $region64: #{tpu_custom_call.1} parent=51 // pred_fallthru
          _
        // Predicated region
        $region65: #{tpu_custom_call.1} parent=51 // pred_check
          %p998 = pneg %p254
        $region66: #{tpu_custom_call.1} parent=51 // pred_check_branch
          %1000 = sbr.rel (%p998) target = $region68
        $region67: #{tpu_custom_call.1} parent=51 // pred_region
          %s1001 = smul.u32 2, %s32
          %s1003 = ssub.s32 128, 128
          %1004 = vsyncadd %s973, %s1003
          %s1005 = smul.addr %s1001, 64
          %s1006 = scalar_lea.hbm %s9, %s1005
          %s1007 = sshll.u32 %s976, 4
          %s1008 = int_to_ptr.vmem [resolvable:$true] %s1007
          %1013 = dma.vmem_to_hbm [thread:$0]  %s1008, 128, %s1006, %s973, 64, 64, 4
        $region68: #{tpu_custom_call.1} parent=51 // pred_fallthru
          _
        // Predicated region
        $region69: #{tpu_custom_call.1} parent=51 // pred_check
          %p1014 = pneg %p280
        $region70: #{tpu_custom_call.1} parent=51 // pred_check_branch
          %1016 = sbr.rel (%p1014) target = $region72
        $region71: #{tpu_custom_call.1} parent=51 // pred_region
          %s1017 = smul.u32 2, %s32
          %s1019 = ssub.s32 256, 256
          %1020 = vsyncadd %s978, %s1019
          %s1021 = smul.addr %s1017, 128
          %s1022 = scalar_lea.hbm %s10, %s1021
          %s1023 = sshll.u32 %s981, 4
          %s1024 = int_to_ptr.vmem [resolvable:$true] %s1023
          %1029 = dma.vmem_to_hbm [thread:$0]  %s1024, 256, %s1022, %s978, 128, 128, 8
        $region72: #{tpu_custom_call.1} parent=51 // pred_fallthru
          _
      $region52: #{tpu_custom_call.1} parent=5 // pred_fallthru
        _
      %p1030 = scmp.le.s32.totalorder 2, %s27
      // Predicated region
      $region73: #{tpu_custom_call.1} parent=5 // pred_check
        %p1031 = pneg %p1030
      $region74: #{tpu_custom_call.1} parent=5 // pred_check_branch
        %1033 = sbr.rel (%p1031) target = $region76
      $region75: #{tpu_custom_call.1} parent=5 // pred_region
        %s1034 = ssub.s32 %s27, 2
        // Predicated region
        $region77: #{tpu_custom_call.1} parent=75 // pred_check
          %p1035 = pneg %p234
        $region78: #{tpu_custom_call.1} parent=75 // pred_check_branch
          %1037 = sbr.rel (%p1035) target = $region80
        $region79: #{tpu_custom_call.1} parent=75 // pred_region
          %s1038 = sand.u32 %s219, 1
          %s1039 = scalar_lea.sflag [#allocation4], %s1038
          %s1040 = sand.u32 %s219, 1
          %s1041 = smul.addr %s1040, 16
          %s1042 = scalar_lea.vmem [#allocation7], %s1041
          %1043 = dma.done %s1039, 256
        $region80: #{tpu_custom_call.1} parent=75 // pred_fallthru
          _
        // Predicated region
        $region81: #{tpu_custom_call.1} parent=75 // pred_check
          %p1044 = pneg %p260
        $region82: #{tpu_custom_call.1} parent=75 // pred_check_branch
          %1046 = sbr.rel (%p1044) target = $region84
        $region83: #{tpu_custom_call.1} parent=75 // pred_region
          %s1047 = sand.u32 %s33, 1
          %s1048 = scalar_lea.sflag [#allocation9], %s1047
          %s1049 = sand.u32 %s245, 1
          %s1050 = smul.addr %s1049, 8
          %s1051 = scalar_lea.vmem [#allocation8], %s1050
          %1052 = dma.done %s1048, 128
        $region84: #{tpu_custom_call.1} parent=75 // pred_fallthru
          _
        // Predicated region
        $region85: #{tpu_custom_call.1} parent=75 // pred_check
          %p1053 = pneg %p286
        $region86: #{tpu_custom_call.1} parent=75 // pred_check_branch
          %1055 = sbr.rel (%p1053) target = $region88
        $region87: #{tpu_custom_call.1} parent=75 // pred_region
          %s1056 = sand.u32 %s33, 1
          %s1057 = scalar_lea.sflag [#allocation9], %s1056
          %s1058 = sand.u32 %s271, 1
          %s1059 = smul.addr %s1058, 16
          %s1060 = scalar_lea.vmem [#allocation10], %s1059
          %1061 = dma.done %s1057, 256
        $region88: #{tpu_custom_call.1} parent=75 // pred_fallthru
          _
      $region76: #{tpu_custom_call.1} parent=5 // pred_fallthru
        _
    $region6: #{tpu_custom_call.1} parent=1 // loop_footer
      %s31 = sadd.s32 1, %s27
    $region7: #{tpu_custom_call.1} parent=1 // loop_footer_branch
      %26 = sbr.rel target = $region3
    $region8: #{tpu_custom_call.1} parent=1 // loop_exit
      _
    %1062 = vsyncpa [#allocation3], 1
    %s1063 = scalar_lea.sflag [#allocation3], 1
    %1064 = vsyncpa %s1063, 1
    %1065 = vsyncpa [#allocation6], 1
    %1066 = vsyncpa [#allocation4], 1
    %s1067 = scalar_lea.sflag [#allocation4], 1
    %1068 = vsyncpa %s1067, 1
    %1069 = vsyncpa [#allocation9], 1
    %s1070 = scalar_lea.sflag [#allocation9], 1
    %1071 = vsyncpa %s1070, 1

</llo_original>
